<compile_context>
chip_gen: v6e
topology: v6e:2x2x1
jax: 0.10.0
libtpu: 0.0.40
codegen_flags: <defaults>
</compile_context>

<pallas_src>
import jax
import jax.numpy as jnp
from jax.experimental import pallas as pl
from jax.experimental.pallas import tpu as pltpu

EPS = 1e-5
C_BLK = 64  # channel tile: C=128 -> 2 grid steps, one per v7x TensorCore


def _bn_kernel(x_ref, g_ref, b_ref, o_ref):
    # x_ref: (N, C_BLK, HW)   g_ref/b_ref: (1, C_BLK, 1)
    x = x_ref[...].astype(jnp.float32)
    n, cb, hw = x.shape
    inv_cnt = jnp.float32(1.0 / (n * hw))

    # Two-pass (centered) per-channel statistics over batch + spatial axes.
    mean = jnp.sum(x, axis=(0, 2), keepdims=True) * inv_cnt        # (1, CB, 1)
    xc = x - mean
    var = jnp.sum(xc * xc, axis=(0, 2), keepdims=True) * inv_cnt   # (1, CB, 1)
    inv_std = jax.lax.rsqrt(var + EPS)                             # EUP

    gamma = g_ref[...].astype(jnp.float32)                         # (1, CB, 1)
    beta = b_ref[...].astype(jnp.float32)                          # (1, CB, 1)

    # Fold normalization + affine: out = (x - mean) * (inv_std * gamma) + beta
    scale = inv_std * gamma
    o_ref[...] = (xc * scale + beta).astype(o_ref.dtype)


def batchnorm2d_pallas(x_nchw, gamma, beta):
    N, C, H, W = x_nchw.shape
    HW = H * W
    cblk = C_BLK if (C % C_BLK == 0) else C

    # Free reshapes of contiguous NCHW — no transpose, no extra HBM pass.
    x3d = x_nchw.reshape(N, C, HW)
    g3d = gamma.reshape(1, C, 1).astype(jnp.float32)
    b3d = beta.reshape(1, C, 1).astype(jnp.float32)

    cost = pl.CostEstimate(
        flops=7 * N * C * HW,
        transcendentals=C,
        bytes_accessed=(2 * N * C * HW + 2 * C) * 4,
    )

    out3d = pl.pallas_call(
        _bn_kernel,
        out_shape=jax.ShapeDtypeStruct((N, C, HW), x_nchw.dtype),
        grid=(C // cblk,),
        in_specs=[
            pl.BlockSpec((N, cblk, HW), lambda c: (0, c, 0)),
            pl.BlockSpec((1, cblk, 1), lambda c: (0, c, 0)),
            pl.BlockSpec((1, cblk, 1), lambda c: (0, c, 0)),
        ],
        out_specs=pl.BlockSpec((N, cblk, HW), lambda c: (0, c, 0)),
        compiler_params=pltpu.CompilerParams(
            dimension_semantics=("parallel",)),
        cost_estimate=cost,
    )(x3d, g3d, b3d)

    # Free reshape back to NCHW.
    return out3d.reshape(N, C, H, W)


def batchnorm2d_ref(x_nchw, gamma, beta):
    mean = jnp.mean(x_nchw, axis=(0, 2, 3), keepdims=True)
    var = jnp.mean((x_nchw - mean) ** 2, axis=(0, 2, 3), keepdims=True)
    g = gamma.reshape(1, -1, 1, 1)
    b = beta.reshape(1, -1, 1, 1)
    return (x_nchw - mean) * jax.lax.rsqrt(var + EPS) * g + b


if __name__ == "__main__":
    key = jax.random.PRNGKey(0)
    kx, kg, kb = jax.random.split(key, 3)

    # Shapes implied by the module: x179 = [1, 128, 14, 14], BatchNorm2d(128)
    N, C, H, W = 1, 128, 14, 14
    x = jax.random.normal(kx, (N, C, H, W), dtype=jnp.float32)

    # PyTorch default init is gamma=1, beta=0; perturb to exercise affine path.
    gamma = 1.0 + 0.1 * jax.random.normal(kg, (C,), dtype=jnp.float32)
    beta = 0.1 * jax.random.normal(kb, (C,), dtype=jnp.float32)

    out = jax.block_until_ready(batchnorm2d_pallas(x, gamma, beta))

    ref = batchnorm2d_ref(x, gamma, beta)
    assert out.shape == (N, C, H, W)
    assert jnp.allclose(out, ref, atol=1e-4, rtol=1e-4), "mismatch vs reference"

    print("KERNEL_OK")
</pallas_src>

<mosaic_0001>
module attributes {stable_mosaic.version = 11 : i64} {
  func.func @_bn_kernel(%arg0: i32, %arg1: memref<1x64x196xf32, #tpu.memory_space<vmem>>, %arg2: memref<1x64x1xf32, #tpu.memory_space<vmem>>, %arg3: memref<1x64x1xf32, #tpu.memory_space<vmem>>, %arg4: memref<1x64x196xf32, #tpu.memory_space<vmem>>) attributes {dimension_semantics = [#tpu.dimension_semantics<parallel>], iteration_bounds = array<i64: 2>, scalar_prefetch = 0 : i64, scratch_operands = 0 : i64, tpu.core_type = #tpu.core_type<tc>, window_params = [{transform_indices = @transform_0, window_bounds = array<i64: 1, 64, 196>}, {transform_indices = @transform_1, window_bounds = array<i64: 1, 64, 1>}, {transform_indices = @transform_2, window_bounds = array<i64: 1, 64, 1>}, {transform_indices = @transform_3, window_bounds = array<i64: 1, 64, 196>}]} {
    %c0 = arith.constant 0 : index
    %c0_0 = arith.constant 0 : index
    %c0_1 = arith.constant 0 : index
    %0 = vector.load %arg1[%c0, %c0_0, %c0_1] : memref<1x64x196xf32, #tpu.memory_space<vmem>>, vector<1x64x196xf32>
    %cst = arith.constant dense<0.000000e+00> : vector<64xf32>
    %1 = vector.multi_reduction <add>, %0, %cst [0, 2] : vector<1x64x196xf32> to vector<64xf32>
    %2 = vector.shape_cast %1 : vector<64xf32> to vector<1x64x1xf32>
    %cst_2 = arith.constant 0.00510204071 : f32
    %3 = vector.broadcast %cst_2 : f32 to vector<1x64x1xf32>
    %4 = arith.mulf %2, %3 : vector<1x64x1xf32>
    %5 = vector.broadcast %4 : vector<1x64x1xf32> to vector<1x64x196xf32>
    %6 = arith.subf %0, %5 : vector<1x64x196xf32>
    %7 = arith.mulf %6, %6 : vector<1x64x196xf32>
    %cst_3 = arith.constant dense<0.000000e+00> : vector<64xf32>
    %8 = vector.multi_reduction <add>, %7, %cst_3 [0, 2] : vector<1x64x196xf32> to vector<64xf32>
    %9 = vector.shape_cast %8 : vector<64xf32> to vector<1x64x1xf32>
    %cst_4 = arith.constant 0.00510204071 : f32
    %10 = vector.broadcast %cst_4 : f32 to vector<1x64x1xf32>
    %11 = arith.mulf %9, %10 : vector<1x64x1xf32>
    %cst_5 = arith.constant 9.99999974E-6 : f32
    %12 = vector.broadcast %cst_5 : f32 to vector<1x64x1xf32>
    %13 = arith.addf %11, %12 : vector<1x64x1xf32>
    %14 = math.rsqrt %13 : vector<1x64x1xf32>
    %c0_6 = arith.constant 0 : index
    %c0_7 = arith.constant 0 : index
    %c0_8 = arith.constant 0 : index
    %15 = vector.load %arg2[%c0_6, %c0_7, %c0_8] : memref<1x64x1xf32, #tpu.memory_space<vmem>>, vector<1x64x1xf32>
    %c0_9 = arith.constant 0 : index
    %c0_10 = arith.constant 0 : index
    %c0_11 = arith.constant 0 : index
    %16 = vector.load %arg3[%c0_9, %c0_10, %c0_11] : memref<1x64x1xf32, #tpu.memory_space<vmem>>, vector<1x64x1xf32>
    %17 = arith.mulf %14, %15 : vector<1x64x1xf32>
    %18 = vector.broadcast %17 : vector<1x64x1xf32> to vector<1x64x196xf32>
    %19 = arith.mulf %6, %18 : vector<1x64x196xf32>
    %20 = vector.broadcast %16 : vector<1x64x1xf32> to vector<1x64x196xf32>
    %21 = arith.addf %19, %20 : vector<1x64x196xf32>
    %c0_12 = arith.constant 0 : index
    %c0_13 = arith.constant 0 : index
    %c0_14 = arith.constant 0 : index
    %22 = vector.load %arg4[%c0_12, %c0_13, %c0_14] : memref<1x64x196xf32, #tpu.memory_space<vmem>>, vector<1x64x196xf32>
    tpu.vector_store %arg4[%c0_12, %c0_13, %c0_14], %21 {strides = array<i32>} : memref<1x64x196xf32, #tpu.memory_space<vmem>>, vector<1x64x196xf32>,
    return
  }
  func.func @transform_0(%arg0: i32) -> (i32, i32, i32) {
    %c0_i32 = arith.constant 0 : i32
    %c0_i32_0 = arith.constant 0 : i32
    %c0_i32_1 = arith.constant 0 : i32
    return %c0_i32, %arg0, %c0_i32_0 : i32, i32, i32
  }
  func.func @transform_1(%arg0: i32) -> (i32, i32, i32) {
    %c0_i32 = arith.constant 0 : i32
    %c0_i32_0 = arith.constant 0 : i32
    %c0_i32_1 = arith.constant 0 : i32
    return %c0_i32, %arg0, %c0_i32_0 : i32, i32, i32
  }
  func.func @transform_2(%arg0: i32) -> (i32, i32, i32) {
    %c0_i32 = arith.constant 0 : i32
    %c0_i32_0 = arith.constant 0 : i32
    %c0_i32_1 = arith.constant 0 : i32
    return %c0_i32, %arg0, %c0_i32_0 : i32, i32, i32
  }
  func.func @transform_3(%arg0: i32) -> (i32, i32, i32) {
    %c0_i32 = arith.constant 0 : i32
    %c0_i32_0 = arith.constant 0 : i32
    %c0_i32_1 = arith.constant 0 : i32
    return %c0_i32, %arg0, %c0_i32_0 : i32, i32, i32
  }
}

</mosaic_0001>

<llo_original>
// kernel: tpu_custom_call.1
$region0: #{tpu_custom_call.1}
  #allocation0 [shape = 'u32[]', space=smem, size = 0x4, offset = 0x4, fixed_abs, tag = 'smem constant byte address 0x4 - core index']
  #allocation1 [shape = 'u32[144,128]{1,0:T(1,128)}', space=vmem, size = 0x12000, scoped, tag = 'internal scratch']
  %s0 = inlined_call_operand.vmem [shape: f32[1,128,196], index: 0, kind: input, shape index: {}]
  %s1 = inlined_call_operand.vmem [shape: f32[1,128,1], index: 1, kind: input, shape index: {}]
  %s2 = inlined_call_operand.vmem [shape: f32[1,128,1], index: 2, kind: input, shape index: {}]
  %s3 = inlined_call_operand.vmem [shape: f32[1,128,196], index: 3, kind: output, shape index: {}]
  %s4 = sld [smem:[#allocation0]]
  $region45: #{tpu_custom_call.1} parent=0
    _
  %s6 = ssub.s32 1, %s4
  %s7 = scalar_select 0, %s6, %s4
  loop: start=0, step=1, limit=4
  $region2: #{tpu_custom_call.1} parent=0 // loop_pre_header
    _
  $region3: #{tpu_custom_call.1} parent=0 // loop_header
    %s9 = sphi 0, %s13
    %p10 = scmp.ge.s32.totalorder %s9, 4
    %s19 = sphi 0, %s21
    %s22 = sphi 0, %s19
    %s23 = sphi 0, %s22
    %s39 = sphi 0, %s23
    %s45 = sphi 0, %s47
    %s48 = sphi 0, %s45
    %s49 = sphi 0, %s48
    %s65 = sphi 0, %s49
    %s71 = sphi 0, %s73
    %s74 = sphi 0, %s71
    %s75 = sphi 0, %s74
    %s91 = sphi 0, %s75
    %s97 = sphi 0, %s99
    %s100 = sphi 0, %s97
    %s101 = sphi 0, %s100
    %s117 = sphi 0, %s101
  $region4: #{tpu_custom_call.1} parent=0 // loop_header_branch
    %12 = sbr.rel (%p10) target = $region8
  $region5: #{tpu_custom_call.1} parent=0 // loop_body
    %s14 = ssub.s32 %s9, 1
    %s15 = ssub.s32 %s9, 2
    %s16 = sadd.s32 %s9, 1
    %s17 = ssub.s32 %s9, %s16
    %p18 = scmp.eq.s32.totalorder %s17, 0
    %s20 = sadd.s32 %s19, 1
    %s21 = scalar_select %p18, %s19, %s20
    %p24 = pneg %p18
    %p25 = scmp.eq.s32.totalorder %s9, 1
    %p26 = por %p24, %p25
    %p27 = scmp.ne.s32.totalorder %s19, %s22
    %p28 = scmp.eq.s32.totalorder %s9, 0
    %p29 = por %p27, %p28
    %p30 = scmp.ne.s32.totalorder %s19, %s22
    %p31 = scmp.eq.s32.totalorder %s14, 1
    %p32 = por %p30, %p31
    %p33 = scmp.ne.s32.totalorder %s22, %s23
    %p34 = scmp.eq.s32.totalorder %s14, 0
    %p35 = por %p33, %p34
    %p36 = scmp.ne.s32.totalorder %s22, %s23
    %p37 = scmp.eq.s32.totalorder %s15, 1
    %p38 = por %p36, %p37
    %p40 = scmp.ne.s32.totalorder %s23, %s39
    %p41 = scmp.eq.s32.totalorder %s15, 0
    %p42 = por %p40, %p41
    %s43 = ssub.s32 %s9, %s16
    %p44 = scmp.eq.s32.totalorder %s43, 0
    %s46 = sadd.s32 %s45, 1
    %s47 = scalar_select %p44, %s45, %s46
    %p50 = pneg %p44
    %p51 = scmp.eq.s32.totalorder %s9, 1
    %p52 = por %p50, %p51
    %p53 = scmp.ne.s32.totalorder %s45, %s48
    %p54 = scmp.eq.s32.totalorder %s9, 0
    %p55 = por %p53, %p54
    %p56 = scmp.ne.s32.totalorder %s45, %s48
    %p57 = scmp.eq.s32.totalorder %s14, 1
    %p58 = por %p56, %p57
    %p59 = scmp.ne.s32.totalorder %s48, %s49
    %p60 = scmp.eq.s32.totalorder %s14, 0
    %p61 = por %p59, %p60
    %p62 = scmp.ne.s32.totalorder %s48, %s49
    %p63 = scmp.eq.s32.totalorder %s15, 1
    %p64 = por %p62, %p63
    %p66 = scmp.ne.s32.totalorder %s49, %s65
    %p67 = scmp.eq.s32.totalorder %s15, 0
    %p68 = por %p66, %p67
    %s69 = ssub.s32 %s9, %s16
    %p70 = scmp.eq.s32.totalorder %s69, 0
    %s72 = sadd.s32 %s71, 1
    %s73 = scalar_select %p70, %s71, %s72
    %p76 = pneg %p70
    %p77 = scmp.eq.s32.totalorder %s9, 1
    %p78 = por %p76, %p77
    %p79 = scmp.ne.s32.totalorder %s71, %s74
    %p80 = scmp.eq.s32.totalorder %s9, 0
    %p81 = por %p79, %p80
    %p82 = scmp.ne.s32.totalorder %s71, %s74
    %p83 = scmp.eq.s32.totalorder %s14, 1
    %p84 = por %p82, %p83
    %p85 = scmp.ne.s32.totalorder %s74, %s75
    %p86 = scmp.eq.s32.totalorder %s14, 0
    %p87 = por %p85, %p86
    %p88 = scmp.ne.s32.totalorder %s74, %s75
    %p89 = scmp.eq.s32.totalorder %s15, 1
    %p90 = por %p88, %p89
    %p92 = scmp.ne.s32.totalorder %s75, %s91
    %p93 = scmp.eq.s32.totalorder %s15, 0
    %p94 = por %p92, %p93
    %s95 = ssub.s32 %s9, %s16
    %p96 = scmp.eq.s32.totalorder %s95, 0
    %s98 = sadd.s32 %s97, 1
    %s99 = scalar_select %p96, %s97, %s98
    %p102 = pneg %p96
    %p103 = scmp.eq.s32.totalorder %s9, 1
    %p104 = por %p102, %p103
    %p105 = scmp.ne.s32.totalorder %s97, %s100
    %p106 = scmp.eq.s32.totalorder %s9, 0
    %p107 = por %p105, %p106
    %p108 = scmp.ne.s32.totalorder %s97, %s100
    %p109 = scmp.eq.s32.totalorder %s14, 1
    %p110 = por %p108, %p109
    %p111 = scmp.ne.s32.totalorder %s100, %s101
    %p112 = scmp.eq.s32.totalorder %s14, 0
    %p113 = por %p111, %p112
    %p114 = scmp.ne.s32.totalorder %s100, %s101
    %p115 = scmp.eq.s32.totalorder %s15, 1
    %p116 = por %p114, %p115
    %p118 = scmp.ne.s32.totalorder %s101, %s117
    %p119 = scmp.eq.s32.totalorder %s15, 0
    %p120 = por %p118, %p119
    %p121 = scmp.le.s32.totalorder 1, %s9
    %p122 = scmp.lt.s32.totalorder %s9, 3
    %p123 = pnand %p121, %p122
    %p124 = pneg %p123
    // Predicated region
    $region9: #{tpu_custom_call.1} parent=5 // pred_check
      _
    $region10: #{tpu_custom_call.1} parent=5 // pred_check_branch
      %126 = sbr.rel (%p123) target = $region12
    $region11: #{tpu_custom_call.1} parent=5 // pred_region
      %s127 = ssub.s32 %s9, 1
    $region12: #{tpu_custom_call.1} parent=5 // pred_fallthru
      _
    %p128 = scmp.lt.s32.totalorder %s9, 2
    // Predicated region
    $region13: #{tpu_custom_call.1} parent=5 // pred_check
      %p129 = pneg %p128
    $region14: #{tpu_custom_call.1} parent=5 // pred_check_branch
      %131 = sbr.rel (%p129) target = $region16
    $region15: #{tpu_custom_call.1} parent=5 // pred_region
      // Predicated region
      $region17: #{tpu_custom_call.1} parent=15 // pred_check
        %p132 = pneg %p29
      $region18: #{tpu_custom_call.1} parent=15 // pred_check_branch
        %134 = sbr.rel (%p132) target = $region20
      $region19: #{tpu_custom_call.1} parent=15 // pred_region
        %s135 = smul.u32 8, %s9
        %p136 = scmp.lt.s32.totalorder %s135, 15
        %s137 = scalar_select %p136, %s135, 15
        %s138 = smul.addr %s137, 2
        %s139 = smul.addr %s138, 8
        %s140 = scalar_lea.vmem %s0, %s139
        %s141 = smul.u32 8, %s9
      $region20: #{tpu_custom_call.1} parent=15 // pred_fallthru
        _
      // Predicated region
      $region21: #{tpu_custom_call.1} parent=15 // pred_check
        %p142 = pneg %p55
      $region22: #{tpu_custom_call.1} parent=15 // pred_check_branch
        %144 = sbr.rel (%p142) target = $region24
      $region23: #{tpu_custom_call.1} parent=15 // pred_region
        %s145 = smul.u32 8, %s9
        %p146 = scmp.lt.s32.totalorder %s145, 15
        %s147 = scalar_select %p146, %s145, 15
        %s148 = smul.addr %s147, 8
        %s149 = scalar_lea.vmem %s1, %s148
        %s150 = smul.u32 8, %s9
      $region24: #{tpu_custom_call.1} parent=15 // pred_fallthru
        _
      // Predicated region
      $region25: #{tpu_custom_call.1} parent=15 // pred_check
        %p151 = pneg %p81
      $region26: #{tpu_custom_call.1} parent=15 // pred_check_branch
        %153 = sbr.rel (%p151) target = $region28
      $region27: #{tpu_custom_call.1} parent=15 // pred_region
        %s154 = smul.u32 8, %s9
        %p155 = scmp.lt.s32.totalorder %s154, 15
        %s156 = scalar_select %p155, %s154, 15
        %s157 = smul.addr %s156, 8
        %s158 = scalar_lea.vmem %s2, %s157
        %s159 = smul.u32 8, %s9
      $region28: #{tpu_custom_call.1} parent=15 // pred_fallthru
        _
    $region16: #{tpu_custom_call.1} parent=5 // pred_fallthru
      _
    %p160 = scmp.le.s32.totalorder 1, %s9
    %p161 = scmp.lt.s32.totalorder %s9, 3
    %p162 = pnand %p160, %p161
    %p163 = pneg %p162
    // Predicated region
    $region29: #{tpu_custom_call.1} parent=5 // pred_check
      _
    $region30: #{tpu_custom_call.1} parent=5 // pred_check_branch
      %165 = sbr.rel (%p162) target = $region32
    $region31: #{tpu_custom_call.1} parent=5 // pred_region
      %s166 = ssub.s32 %s9, 1
      %s167 = smul.u32 8, %s14
      %p168 = scmp.lt.s32.totalorder %s167, 15
      %s169 = scalar_select %p168, %s167, 15
      %s170 = smul.addr %s169, 2
      %s171 = smul.addr %s170, 8
      %s172 = scalar_lea.vmem %s0, %s171
      %p173 = pneg %p35
      %p174 = pneg %p32
      %s175 = smul.u32 8, %s14
      %p176 = scmp.lt.s32.totalorder %s175, 15
      %s177 = scalar_select %p176, %s175, 15
      %s178 = smul.addr %s177, 8
      %s179 = scalar_lea.vmem %s1, %s178
      %p180 = pneg %p61
      %p181 = pneg %p58
      %s182 = smul.u32 8, %s14
      %p183 = scmp.lt.s32.totalorder %s182, 15
      %s184 = scalar_select %p183, %s182, 15
      %s185 = smul.addr %s184, 8
      %s186 = scalar_lea.vmem %s2, %s185
      %p187 = pneg %p87
      %p188 = pneg %p84
      %p189 = pneg %p113
      %p190 = pneg %p110
      %s191 = smul.u32 8, %s14
      %p192 = scmp.lt.s32.totalorder %s191, 15
      %s193 = scalar_select %p192, %s191, 15
      %s194 = smul.addr %s193, 2
      %s195 = smul.addr %s194, 8
      %s196 = scalar_lea.vmem %s3, %s195
      %s197 = smul.u32 8, %s14
      %p198 = scmp.lt.s32.totalorder %s197, 15
      %s199 = scalar_select %p198, %s197, 15
      %s200 = smul.addr %s199, 2
      %s201 = smul.addr %s200, 8
      %s202 = scalar_lea.vmem %s0, %s201
      %s203 = smul.u32 8, %s14
      %s204 = smul.u32 8, %s14
      %p205 = scmp.lt.s32.totalorder %s204, 15
      %s206 = scalar_select %p205, %s204, 15
      %s207 = smul.addr %s206, 8
      %s208 = scalar_lea.vmem %s1, %s207
      %s209 = smul.u32 8, %s14
      %s210 = smul.u32 8, %s14
      %p211 = scmp.lt.s32.totalorder %s210, 15
      %s212 = scalar_select %p211, %s210, 15
      %s213 = smul.addr %s212, 8
      %s214 = scalar_lea.vmem %s2, %s213
      %s215 = smul.u32 8, %s14
      %s216 = smul.u32 8, %s14
      %p217 = scmp.lt.s32.totalorder %s216, 15
      %s218 = scalar_select %p217, %s216, 15
      %s219 = smul.addr %s218, 2
      %s220 = smul.addr %s219, 8
      %s221 = scalar_lea.vmem %s3, %s220
      %s222 = smul.u32 8, %s14
      %v223 = vld [vmem:[%s202] sm:$0xff]
      %v224 = vld [vmem:[%s202 + $0x8] sm:$0xff]
      %v225 = vld [vmem:[%s202 + $0x10] sm:$0xff]
      %v226 = vld [vmem:[%s202 + $0x18] sm:$0xff]
      %v227 = vld [vmem:[%s202 + $0x20] sm:$0xff]
      %v228 = vld [vmem:[%s202 + $0x28] sm:$0xff]
      %v229 = vld [vmem:[%s202 + $0x30] sm:$0xff]
      %v230 = vld [vmem:[%s202 + $0x38] sm:$0xff]
      %v231 = vld [vmem:[%s202 + $0x40] sm:$0xff]
      %v232 = vld [vmem:[%s202 + $0x48] sm:$0xff]
      %v233 = vld [vmem:[%s202 + $0x50] sm:$0xff]
      %v234 = vld [vmem:[%s202 + $0x58] sm:$0xff]
      %v235 = vld [vmem:[%s202 + $0x60] sm:$0xff]
      %v236 = vld [vmem:[%s202 + $0x68] sm:$0xff]
      %v237 = vld [vmem:[%s202 + $0x70] sm:$0xff]
      %v238 = vld [vmem:[%s202 + $0x78] sm:$0xff]
      %vm239 = vcmask 556032
      %v240 = vsel %vm239, %v224, 0.0
      %v241 = vadd.f32 %v223, %v240
      %242 = vadd.xlane.f32.xlu0 %v241
      %v243 = vpop.xlane.xlu0 %242
      %v244 = vsel %vm239, %v226, 0.0
      %v245 = vadd.f32 %v225, %v244
      %246 = vadd.xlane.f32.xlu0 %v245
      %v247 = vpop.xlane.xlu0 %246
      %v248 = vsel %vm239, %v228, 0.0
      %v249 = vadd.f32 %v227, %v248
      %250 = vadd.xlane.f32.xlu0 %v249
      %v251 = vpop.xlane.xlu0 %250
      %v252 = vsel %vm239, %v230, 0.0
      %v253 = vadd.f32 %v229, %v252
      %254 = vadd.xlane.f32.xlu0 %v253
      %v255 = vpop.xlane.xlu0 %254
      %v256 = vsel %vm239, %v232, 0.0
      %v257 = vadd.f32 %v231, %v256
      %258 = vadd.xlane.f32.xlu0 %v257
      %v259 = vpop.xlane.xlu0 %258
      %v260 = vsel %vm239, %v234, 0.0
      %v261 = vadd.f32 %v233, %v260
      %262 = vadd.xlane.f32.xlu0 %v261
      %v263 = vpop.xlane.xlu0 %262
      %v264 = vsel %vm239, %v236, 0.0
      %v265 = vadd.f32 %v235, %v264
      %266 = vadd.xlane.f32.xlu0 %v265
      %v267 = vpop.xlane.xlu0 %266
      %v268 = vsel %vm239, %v238, 0.0
      %v269 = vadd.f32 %v237, %v268
      %270 = vadd.xlane.f32.xlu0 %v269
      %v271 = vpop.xlane.xlu0 %270
      %v272 = vmul.f32 %v243, 0.0051020407
      %v273 = vmul.f32 %v247, 0.0051020407
      %v274 = vmul.f32 %v251, 0.0051020407
      %v275 = vmul.f32 %v255, 0.0051020407
      %v276 = vmul.f32 %v259, 0.0051020407
      %v277 = vmul.f32 %v263, 0.0051020407
      %v278 = vmul.f32 %v267, 0.0051020407
      %v279 = vmul.f32 %v271, 0.0051020407
      %v280 = vsub.f32 %v223, %v272
      %v281 = vsub.f32 %v224, %v272
      %v282 = vsub.f32 %v225, %v273
      %v283 = vsub.f32 %v226, %v273
      %v284 = vsub.f32 %v227, %v274
      %v285 = vsub.f32 %v228, %v274
      %v286 = vsub.f32 %v229, %v275
      %v287 = vsub.f32 %v230, %v275
      %v288 = vsub.f32 %v231, %v276
      %v289 = vsub.f32 %v232, %v276
      %v290 = vsub.f32 %v233, %v277
      %v291 = vsub.f32 %v234, %v277
      %v292 = vsub.f32 %v235, %v278
      %v293 = vsub.f32 %v236, %v278
      %v294 = vsub.f32 %v237, %v279
      %v295 = vsub.f32 %v238, %v279
      %v296 = vmul.f32 %v280, %v280
      %v297 = vmul.f32 %v281, %v281
      %v298 = vmul.f32 %v282, %v282
      %v299 = vmul.f32 %v283, %v283
      %v300 = vmul.f32 %v284, %v284
      %v301 = vmul.f32 %v285, %v285
      %v302 = vmul.f32 %v286, %v286
      %v303 = vmul.f32 %v287, %v287
      %v304 = vmul.f32 %v288, %v288
      %v305 = vmul.f32 %v289, %v289
      %v306 = vmul.f32 %v290, %v290
      %v307 = vmul.f32 %v291, %v291
      %v308 = vmul.f32 %v292, %v292
      %v309 = vmul.f32 %v293, %v293
      %v310 = vmul.f32 %v294, %v294
      %v311 = vmul.f32 %v295, %v295
      %v312 = vsel %vm239, %v297, 0.0
      %v313 = vadd.f32 %v296, %v312
      %314 = vadd.xlane.f32.xlu0 %v313
      %v315 = vpop.xlane.xlu0 %314
      %v316 = vsel %vm239, %v299, 0.0
      %v317 = vadd.f32 %v298, %v316
      %318 = vadd.xlane.f32.xlu0 %v317
      %v319 = vpop.xlane.xlu0 %318
      %v320 = vsel %vm239, %v301, 0.0
      %v321 = vadd.f32 %v300, %v320
      %322 = vadd.xlane.f32.xlu0 %v321
      %v323 = vpop.xlane.xlu0 %322
      %v324 = vsel %vm239, %v303, 0.0
      %v325 = vadd.f32 %v302, %v324
      %326 = vadd.xlane.f32.xlu0 %v325
      %v327 = vpop.xlane.xlu0 %326
      %v328 = vsel %vm239, %v305, 0.0
      %v329 = vadd.f32 %v304, %v328
      %330 = vadd.xlane.f32.xlu0 %v329
      %v331 = vpop.xlane.xlu0 %330
      %v332 = vsel %vm239, %v307, 0.0
      %v333 = vadd.f32 %v306, %v332
      %334 = vadd.xlane.f32.xlu0 %v333
      %v335 = vpop.xlane.xlu0 %334
      %v336 = vsel %vm239, %v309, 0.0
      %v337 = vadd.f32 %v308, %v336
      %338 = vadd.xlane.f32.xlu0 %v337
      %v339 = vpop.xlane.xlu0 %338
      %v340 = vsel %vm239, %v311, 0.0
      %v341 = vadd.f32 %v310, %v340
      %342 = vadd.xlane.f32.xlu0 %v341
      %v343 = vpop.xlane.xlu0 %342
      %v344 = vmul.f32 %v315, 0.0051020407
      %v345 = vmul.f32 %v319, 0.0051020407
      %v346 = vmul.f32 %v323, 0.0051020407
      %v347 = vmul.f32 %v327, 0.0051020407
      %v348 = vmul.f32 %v331, 0.0051020407
      %v349 = vmul.f32 %v335, 0.0051020407
      %v350 = vmul.f32 %v339, 0.0051020407
      %v351 = vmul.f32 %v343, 0.0051020407
      %v352 = vadd.f32 %v344, 1e-05
      %v353 = vadd.f32 %v345, 1e-05
      %v354 = vadd.f32 %v346, 1e-05
      %v355 = vadd.f32 %v347, 1e-05
      %v356 = vadd.f32 %v348, 1e-05
      %v357 = vadd.f32 %v349, 1e-05
      %v358 = vadd.f32 %v350, 1e-05
      %v359 = vadd.f32 %v351, 1e-05
      %v360 = vrsqrt.pop %v352
      %v361 = vrsqrt.pop %v353
      %v362 = vrsqrt.pop %v354
      %v363 = vrsqrt.pop %v355
      %v364 = vrsqrt.pop %v356
      %v365 = vrsqrt.pop %v357
      %v366 = vrsqrt.pop %v358
      %v367 = vrsqrt.pop %v359
      %v368 = vld [vmem:[%s208] sm:$0xff]
      %v369 = vld [vmem:[%s208 + $0x8] sm:$0xff]
      %v370 = vld [vmem:[%s208 + $0x10] sm:$0xff]
      %v371 = vld [vmem:[%s208 + $0x18] sm:$0xff]
      %v372 = vld [vmem:[%s208 + $0x20] sm:$0xff]
      %v373 = vld [vmem:[%s208 + $0x28] sm:$0xff]
      %v374 = vld [vmem:[%s208 + $0x30] sm:$0xff]
      %v375 = vld [vmem:[%s208 + $0x38] sm:$0xff]
      %v376 = vld [vmem:[%s214] sm:$0xff]
      %v377 = vld [vmem:[%s214 + $0x8] sm:$0xff]
      %v378 = vld [vmem:[%s214 + $0x10] sm:$0xff]
      %v379 = vld [vmem:[%s214 + $0x18] sm:$0xff]
      %v380 = vld [vmem:[%s214 + $0x20] sm:$0xff]
      %v381 = vld [vmem:[%s214 + $0x28] sm:$0xff]
      %v382 = vld [vmem:[%s214 + $0x30] sm:$0xff]
      %v383 = vld [vmem:[%s214 + $0x38] sm:$0xff]
      %v384 = vmul.f32 %v360, %v368
      %v385 = vmul.f32 %v361, %v369
      %v386 = vmul.f32 %v362, %v370
      %v387 = vmul.f32 %v363, %v371
      %v388 = vmul.f32 %v364, %v372
      %v389 = vmul.f32 %v365, %v373
      %v390 = vmul.f32 %v366, %v374
      %v391 = vmul.f32 %v367, %v375
      %393 = vset.pattern.permute.xlu0 0
      %394 = vperm.xlu0 %393, %v384
      %v395 = vpop.permute.xlu0 %394
      %398 = vset.pattern.permute.xlu0 0
      %399 = vperm.xlu0 %398, %v385
      %v400 = vpop.permute.xlu0 %399
      %403 = vset.pattern.permute.xlu0 0
      %404 = vperm.xlu0 %403, %v386
      %v405 = vpop.permute.xlu0 %404
      %408 = vset.pattern.permute.xlu0 0
      %409 = vperm.xlu0 %408, %v387
      %v410 = vpop.permute.xlu0 %409
      %413 = vset.pattern.permute.xlu0 0
      %414 = vperm.xlu0 %413, %v388
      %v415 = vpop.permute.xlu0 %414
      %418 = vset.pattern.permute.xlu0 0
      %419 = vperm.xlu0 %418, %v389
      %v420 = vpop.permute.xlu0 %419
      %423 = vset.pattern.permute.xlu0 0
      %424 = vperm.xlu0 %423, %v390
      %v425 = vpop.permute.xlu0 %424
      %428 = vset.pattern.permute.xlu0 0
      %429 = vperm.xlu0 %428, %v391
      %v430 = vpop.permute.xlu0 %429
      %v432 = vmul.f32 %v280, %v395
      %v433 = vmul.f32 %v281, %v395
      %v434 = vmul.f32 %v282, %v400
      %v435 = vmul.f32 %v283, %v400
      %v436 = vmul.f32 %v284, %v405
      %v437 = vmul.f32 %v285, %v405
      %v438 = vmul.f32 %v286, %v410
      %v439 = vmul.f32 %v287, %v410
      %v440 = vmul.f32 %v288, %v415
      %v441 = vmul.f32 %v289, %v415
      %v442 = vmul.f32 %v290, %v420
      %v443 = vmul.f32 %v291, %v420
      %v444 = vmul.f32 %v292, %v425
      %v445 = vmul.f32 %v293, %v425
      %v446 = vmul.f32 %v294, %v430
      %v447 = vmul.f32 %v295, %v430
      %449 = vset.pattern.permute.xlu0 0
      %450 = vperm.xlu0 %449, %v376
      %v451 = vpop.permute.xlu0 %450
      %454 = vset.pattern.permute.xlu0 0
      %455 = vperm.xlu0 %454, %v377
      %v456 = vpop.permute.xlu0 %455
      %459 = vset.pattern.permute.xlu0 0
      %460 = vperm.xlu0 %459, %v378
      %v461 = vpop.permute.xlu0 %460
      %464 = vset.pattern.permute.xlu0 0
      %465 = vperm.xlu0 %464, %v379
      %v466 = vpop.permute.xlu0 %465
      %469 = vset.pattern.permute.xlu0 0
      %470 = vperm.xlu0 %469, %v380
      %v471 = vpop.permute.xlu0 %470
      %474 = vset.pattern.permute.xlu0 0
      %475 = vperm.xlu0 %474, %v381
      %v476 = vpop.permute.xlu0 %475
      %479 = vset.pattern.permute.xlu0 0
      %480 = vperm.xlu0 %479, %v382
      %v481 = vpop.permute.xlu0 %480
      %484 = vset.pattern.permute.xlu0 0
      %485 = vperm.xlu0 %484, %v383
      %v486 = vpop.permute.xlu0 %485
      %v488 = vadd.f32 %v432, %v451
      %v489 = vadd.f32 %v433, %v451
      %v490 = vadd.f32 %v434, %v456
      %v491 = vadd.f32 %v435, %v456
      %v492 = vadd.f32 %v436, %v461
      %v493 = vadd.f32 %v437, %v461
      %v494 = vadd.f32 %v438, %v466
      %v495 = vadd.f32 %v439, %v466
      %v496 = vadd.f32 %v440, %v471
      %v497 = vadd.f32 %v441, %v471
      %v498 = vadd.f32 %v442, %v476
      %v499 = vadd.f32 %v443, %v476
      %v500 = vadd.f32 %v444, %v481
      %v501 = vadd.f32 %v445, %v481
      %v502 = vadd.f32 %v446, %v486
      %v503 = vadd.f32 %v447, %v486
      %504 = vst [vmem:[%s221] sm:$0xff] %v488
      %505 = vst.msk [vmem:[%s221 + $0x8] sm:$0xff] %vm239, %v489
      %506 = vst [vmem:[%s221 + $0x10] sm:$0xff] %v490
      %507 = vst.msk [vmem:[%s221 + $0x18] sm:$0xff] %vm239, %v491
      %508 = vst [vmem:[%s221 + $0x20] sm:$0xff] %v492
      %509 = vst.msk [vmem:[%s221 + $0x28] sm:$0xff] %vm239, %v493
      %510 = vst [vmem:[%s221 + $0x30] sm:$0xff] %v494
      %511 = vst.msk [vmem:[%s221 + $0x38] sm:$0xff] %vm239, %v495
      %512 = vst [vmem:[%s221 + $0x40] sm:$0xff] %v496
      %513 = vst.msk [vmem:[%s221 + $0x48] sm:$0xff] %vm239, %v497
      %514 = vst [vmem:[%s221 + $0x50] sm:$0xff] %v498
      %515 = vst.msk [vmem:[%s221 + $0x58] sm:$0xff] %vm239, %v499
      %516 = vst [vmem:[%s221 + $0x60] sm:$0xff] %v500
      %517 = vst.msk [vmem:[%s221 + $0x68] sm:$0xff] %vm239, %v501
      %518 = vst [vmem:[%s221 + $0x70] sm:$0xff] %v502
      %519 = vst.msk [vmem:[%s221 + $0x78] sm:$0xff] %vm239, %v503
      %s520 = smul.u32 8, %s14
      %p521 = scmp.lt.s32.totalorder %s520, 15
      %s522 = scalar_select %p521, %s520, 15
      %s523 = smul.addr %s522, 2
      %s524 = smul.addr %s523, 8
      %s525 = scalar_lea.vmem %s3, %s524
      // Predicated region
      $region33: #{tpu_custom_call.1} parent=31 // pred_check
        %p526 = pneg %p110
      $region34: #{tpu_custom_call.1} parent=31 // pred_check_branch
        %528 = sbr.rel (%p526) target = $region36
      $region35: #{tpu_custom_call.1} parent=31 // pred_region
        %s529 = smul.u32 8, %s14
      $region36: #{tpu_custom_call.1} parent=31 // pred_fallthru
        _
    $region32: #{tpu_custom_call.1} parent=5 // pred_fallthru
      _
    %p530 = scmp.le.s32.totalorder 2, %s9
    // Predicated region
    $region37: #{tpu_custom_call.1} parent=5 // pred_check
      %p531 = pneg %p530
    $region38: #{tpu_custom_call.1} parent=5 // pred_check_branch
      %533 = sbr.rel (%p531) target = $region40
    $region39: #{tpu_custom_call.1} parent=5 // pred_region
      %s534 = ssub.s32 %s9, 2
      // Predicated region
      $region41: #{tpu_custom_call.1} parent=39 // pred_check
        %p535 = pneg %p116
      $region42: #{tpu_custom_call.1} parent=39 // pred_check_branch
        %537 = sbr.rel (%p535) target = $region44
      $region43: #{tpu_custom_call.1} parent=39 // pred_region
        %s538 = smul.u32 8, %s15
        %p539 = scmp.lt.s32.totalorder %s538, 15
        %s540 = scalar_select %p539, %s538, 15
        %s541 = smul.addr %s540, 2
        %s542 = smul.addr %s541, 8
        %s543 = scalar_lea.vmem %s3, %s542
      $region44: #{tpu_custom_call.1} parent=39 // pred_fallthru
        _
    $region40: #{tpu_custom_call.1} parent=5 // pred_fallthru
      _
  $region6: #{tpu_custom_call.1} parent=0 // loop_footer
    %s13 = sadd.s32 1, %s9
  $region7: #{tpu_custom_call.1} parent=0 // loop_footer_branch
    %8 = sbr.rel target = $region3
  $region8: #{tpu_custom_call.1} parent=0 // loop_exit
    _

</llo_original>
